<compile_context>
chip_gen: v7x
topology: tpu7x:2x2x1
jax: 0.10.0
libtpu: 0.0.40
codegen_flags: <defaults>
</compile_context>

<pallas_src>
import functools
import math

import jax
import jax.numpy as jnp
from jax.experimental import pallas as pl
from jax.experimental.pallas import tpu as pltpu

NUM_CLASSES = 14
LANE = 128
HW_TILE_CAP = 512   # safe across v5e/v6e/v7x (incl. LSE's f32 intermediates);
                    # v5e/v6e could push 1024-2048, v7x should stay <= ~1024.


def _round_up(x, m):
    return ((x + m - 1) // m) * m


def _choose_tile(hw, cap=HW_TILE_CAP):
    """Pick the HW tile. Returns (t_hw, hw_padded, masked)."""
    if hw % 128 == 0:
        best, d = 128, 128
        while d <= min(hw, cap):
            if hw % d == 0:
                best = d
            d += 128
        return best, hw, False
    if hw <= 1024:
        # Small odd spatial size (e.g. real DenseNet's 7x7=49): one full block.
        return hw, hw, False
    # Large odd spatial size: pad to a multiple of 128 and mask the tail.
    hw_pad = _round_up(hw, 128)
    best, d = 128, 128
    while d <= min(hw_pad, cap):
        if hw_pad % d == 0:
            best = d
        d += 128
    return best, hw_pad, True


# -----------------------------------------------------------------------------
# Fused kernel:  features (1x1 conv) + ReLU + global pool + Linear + Sigmoid.
# grid = (N, HW_tiles); per-batch pooling stats live in VMEM scratch.
# Feature tile layout: (Cf_pad, t_hw)  — channels on sublanes, pixels on lanes.
# -----------------------------------------------------------------------------
def _fused_kernel(x_ref, fw_ref, fb_ref, cw_ref, cb_ref, o_ref,
                  m_ref, l_ref, *, mode, inv_hw, r, hw, masked):
    k = pl.program_id(1)
    n_k = pl.num_programs(1)

    @pl.when(k == 0)
    def _init():
        # Post-ReLU values are >= 0, so 0 is a safe identity for the running max.
        # (If the in-kernel ReLU were removed, this must become -inf.)
        m_ref[...] = jnp.zeros_like(m_ref)
        l_ref[...] = jnp.zeros_like(l_ref)

    # "features" stand-in: 1x1 pointwise conv over channels.
    # fw_ref: (Cf_pad, Cin) bf16 ; x tile: (Cin, t_hw) cast to bf16 in-kernel.
    xt = x_ref[0].astype(jnp.bfloat16)
    ft = jnp.dot(fw_ref[...], xt, preferred_element_type=jnp.float32)
    ft = jnp.maximum(ft + fb_ref[...], 0.0)          # ReLU, (Cf_pad, t_hw) f32

    if masked:
        # Tail-padding mask (only compiled in when HW was padded to 128*k).
        col = jax.lax.broadcasted_iota(jnp.int32, (1, ft.shape[1]), 1) \
            + k * ft.shape[1]
        valid = col < hw
        ft = jnp.where(valid, ft, 0.0)                # 0 is neutral post-ReLU

    if mode == "MAX":
        m_ref[...] = jnp.maximum(m_ref[...], jnp.max(ft, axis=1, keepdims=True))
    elif mode == "AVG":
        l_ref[...] = l_ref[...] + jnp.sum(ft, axis=1, keepdims=True)
    elif mode == "LSE":
        # Online (rescaled) exp-sum; exponents are always <= 0 -> no overflow.
        m_old = m_ref[...]
        m_new = jnp.maximum(m_old, jnp.max(ft, axis=1, keepdims=True))
        p = jnp.exp(r * (ft - m_new))
        if masked:
            p = jnp.where(valid, p, 0.0)
        l_ref[...] = (l_ref[...] * jnp.exp(r * (m_old - m_new))
                      + jnp.sum(p, axis=1, keepdims=True))
        m_ref[...] = m_new
    else:
        raise ValueError("Invalid pooling")

    @pl.when(k == n_k - 1)
    def _finalize():
        if mode == "MAX":
            pooled = m_ref[...]
        elif mode == "AVG":
            pooled = l_ref[...] * inv_hw
        else:  # LSE:  x_max + 1/r * log( (1/HW) * sum exp(r*(x - x_max)) )
            pooled = m_ref[...] + (1.0 / r) * jnp.log(l_ref[...] * inv_hw)
        # Classifier: (K_pad, Cf_pad) @ (Cf_pad, 1) -> (K_pad, 1), f32 acc.
        z = (jnp.dot(cw_ref[...].astype(jnp.float32), pooled,
                     preferred_element_type=jnp.float32) + cb_ref[...])
        # Sigmoid via tanh: exact, numerically stable, runs on the EUP slot.
        sig = 0.5 * (jnp.tanh(0.5 * z) + 1.0)
        o_ref[...] = sig[None, :, :]


# -----------------------------------------------------------------------------
# Forward pass (all hot compute in a single fused pallas_call; the only wrapper
# work is a free NCHW -> (N, Cin, HW) reshape).
# -----------------------------------------------------------------------------
@functools.partial(jax.jit, static_argnames=("pooling", "lse_r", "num_classes"))
def densenet_forward(x_nchw, params, *, pooling, lse_r=10.0,
                     num_classes=NUM_CLASSES):
    if pooling not in ("MAX", "AVG", "LSE"):
        raise ValueError("Invalid pooling")
    N, Cin, H, W = x_nchw.shape
    HW = H * W

    fw = params["feat_w_t"]     # (Cf_pad, Cin)   bf16
    fb = params["feat_b"]       # (Cf_pad, 1)     f32
    cw = params["cls_w"]        # (K_pad, Cf_pad) bf16
    cb = params["cls_b"]        # (K_pad, 1)      f32
    Cf_pad = fw.shape[0]
    K_pad = cw.shape[0]

    t_hw, hw_pad, masked = _choose_tile(HW)
    n_hw = hw_pad // t_hw

    # Free view: pixels land on the lane axis, channels (3-4) stay tiny on the
    # second-to-last dim; no transpose / cast glue op touching HBM.
    x = x_nchw.reshape(N, Cin, HW)
    if masked:
        x = jnp.pad(x, ((0, 0), (0, 0), (0, hw_pad - HW)))

    flops = 2 * N * hw_pad * Cin * Cf_pad + 2 * N * Cf_pad * K_pad
    transcendentals = (N * (hw_pad + n_hw + 1) * Cf_pad
                       if pooling == "LSE" else 0) + N * K_pad
    bytes_accessed = (x.size * 4 + fw.size * 2 + fb.size * 4
                      + cw.size * 2 + cb.size * 4 + N * K_pad * 4)

    kern = functools.partial(_fused_kernel, mode=pooling,
                             inv_hw=1.0 / float(HW), r=float(lse_r),
                             hw=HW, masked=masked)

    out = pl.pallas_call(
        kern,
        out_shape=jax.ShapeDtypeStruct((N, K_pad, 1), jnp.float32),
        grid=(N, n_hw),
        in_specs=[
            pl.BlockSpec((1, Cin, t_hw), lambda n, k: (n, 0, k)),   # x tile
            pl.BlockSpec((Cf_pad, Cin), lambda n, k: (0, 0)),       # feat_w^T
            pl.BlockSpec((Cf_pad, 1), lambda n, k: (0, 0)),         # feat_b
            pl.BlockSpec((K_pad, Cf_pad), lambda n, k: (0, 0)),     # cls_w
            pl.BlockSpec((K_pad, 1), lambda n, k: (0, 0)),          # cls_b
        ],
        out_specs=pl.BlockSpec((1, K_pad, 1), lambda n, k: (n, 0, 0)),
        scratch_shapes=[
            pltpu.VMEM((Cf_pad, 1), jnp.float32),   # running max
            pltpu.VMEM((Cf_pad, 1), jnp.float32),   # running sum / exp-sum
        ],
        compiler_params=pltpu.CompilerParams(
            dimension_semantics=("parallel", "arbitrary")),
        cost_estimate=pl.CostEstimate(flops=flops,
                                      transcendentals=transcendentals,
                                      bytes_accessed=bytes_accessed),
    )(x, fw, fb, cw, cb)

    # Padded classes come out as sigmoid(0)=0.5; slice them off here.
    return out[:, :num_classes, 0]


# -----------------------------------------------------------------------------
# Parameters (channel / class dims padded to 128 with zeros; padded channels
# and classes contribute nothing to the real outputs).
# -----------------------------------------------------------------------------
def init_params(key, cin, cf, num_classes=NUM_CLASSES):
    cf_pad = _round_up(cf, LANE)
    k_pad = _round_up(num_classes, LANE)
    k1, k2, k3, k4 = jax.random.split(key, 4)

    # 1x1-conv feature stand-in (kaiming-ish scale), stored transposed (Cf, Cin).
    feat_w = jax.random.normal(k1, (cf, cin), jnp.float32) * math.sqrt(2.0 / cin)
    feat_b = jax.random.normal(k2, (cf,), jnp.float32) * 0.01
    # nn.Linear(num_ftrs, 14): weight (14, Cf), bias (14,).
    bound = 1.0 / math.sqrt(cf)
    cls_w = jax.random.uniform(k3, (num_classes, cf), jnp.float32, -bound, bound)
    cls_b = jax.random.uniform(k4, (num_classes,), jnp.float32, -bound, bound)

    feat_w_p = jnp.zeros((cf_pad, cin), jnp.float32).at[:cf, :].set(feat_w)
    feat_b_p = jnp.zeros((cf_pad, 1), jnp.float32).at[:cf, 0].set(feat_b)
    cls_w_p = jnp.zeros((k_pad, cf_pad), jnp.float32) \
        .at[:num_classes, :cf].set(cls_w)
    cls_b_p = jnp.zeros((k_pad, 1), jnp.float32).at[:num_classes, 0].set(cls_b)

    return {
        "feat_w_t": feat_w_p.astype(jnp.bfloat16),   # (Cf_pad, Cin)
        "feat_b": feat_b_p,                          # (Cf_pad, 1)
        "cls_w": cls_w_p.astype(jnp.bfloat16),       # (K_pad, Cf_pad)
        "cls_b": cls_b_p,                            # (K_pad, 1)
    }


# -----------------------------------------------------------------------------
# Pure-JAX reference (same math) for a correctness check.
# -----------------------------------------------------------------------------
def _reference_forward(x_nchw, params, pooling, lse_r, num_classes=NUM_CLASSES):
    N, Cin, H, W = x_nchw.shape
    HW = H * W
    xb = x_nchw.reshape(N, Cin, HW).astype(jnp.bfloat16).astype(jnp.float32)
    fw = params["feat_w_t"].astype(jnp.float32)              # (Cf_pad, Cin)
    f = jnp.einsum("fc,ncs->nfs", fw, xb,
                   precision=jax.lax.Precision.HIGHEST)
    f = jnp.maximum(f + params["feat_b"][None, :, :], 0.0)   # (N, Cf_pad, HW)
    if pooling == "MAX":
        pooled = f.max(axis=2)
    elif pooling == "AVG":
        pooled = f.mean(axis=2)
    elif pooling == "LSE":
        m = f.max(axis=2)
        pooled = m + (1.0 / lse_r) * jnp.log(
            jnp.exp(lse_r * (f - m[:, :, None])).sum(axis=2) / HW)
    else:
        raise ValueError("Invalid pooling")
    z = jnp.einsum("nf,kf->nk", pooled, params["cls_w"].astype(jnp.float32),
                   precision=jax.lax.Precision.HIGHEST) + params["cls_b"][:, 0]
    return jax.nn.sigmoid(z)[:, :num_classes]


if __name__ == "__main__":
    key = jax.random.PRNGKey(0)
    kx, kp = jax.random.split(key)

    N, Cin = 2, 4
    Cf = 32                          # synthetic num_ftrs (1024 in real densenet121)
    params = init_params(kp, Cin, Cf)

    # 16x16 -> single HW tile; 32x32 -> 2 HW tiles (exercises the online pooling).
    for (H, W) in ((16, 16), (32, 32)):
        x = jax.random.normal(jax.random.fold_in(kx, H),
                              (N, Cin, H, W), jnp.float32)
        for pooling in ("MAX", "AVG", "LSE"):
            y = densenet_forward(x, params, pooling=pooling, lse_r=10.0)
            y = jax.block_until_ready(y)
            assert y.shape == (N, NUM_CLASSES), y.shape
            assert bool(jnp.all(jnp.isfinite(y)))
            assert bool(jnp.all((y >= 0.0) & (y <= 1.0)))     # sigmoid range
            y_ref = _reference_forward(x, params, pooling, 10.0)
            assert bool(jnp.allclose(y, y_ref, atol=2e-3, rtol=2e-2)), (
                pooling, (H, W), float(jnp.max(jnp.abs(y - y_ref))))

    print("KERNEL_OK")
</pallas_src>

<mosaic_0001>
module attributes {stable_mosaic.version = 11 : i64} {
  func.func @_fused_kernel(%arg0: i32, %arg1: i32, %arg2: memref<1x4x256xf32, #tpu.memory_space<vmem>>, %arg3: memref<128x4xbf16, #tpu.memory_space<vmem>>, %arg4: memref<128x1xf32, #tpu.memory_space<vmem>>, %arg5: memref<128x128xbf16, #tpu.memory_space<vmem>>, %arg6: memref<128x1xf32, #tpu.memory_space<vmem>>, %arg7: memref<1x128x1xf32, #tpu.memory_space<vmem>>, %arg8: memref<128x1xf32, #tpu.memory_space<vmem>>, %arg9: memref<128x1xf32, #tpu.memory_space<vmem>>) attributes {dimension_semantics = [#tpu.dimension_semantics<parallel>, #tpu.dimension_semantics<arbitrary>], iteration_bounds = array<i64: 2, 1>, scalar_prefetch = 0 : i64, scratch_operands = 2 : i64, tpu.core_type = #tpu.core_type<tc>, window_params = [{transform_indices = @transform_0, window_bounds = array<i64: 1, 4, 256>}, {pipeline_mode = #tpu.pipeline_mode<synchronous>, transform_indices = @transform_1, window_bounds = array<i64: 128, 4>}, {pipeline_mode = #tpu.pipeline_mode<synchronous>, transform_indices = @transform_2, window_bounds = array<i64: 128, 1>}, {pipeline_mode = #tpu.pipeline_mode<synchronous>, transform_indices = @transform_3, window_bounds = array<i64: 128, 128>}, {pipeline_mode = #tpu.pipeline_mode<synchronous>, transform_indices = @transform_4, window_bounds = array<i64: 128, 1>}, {transform_indices = @transform_5, window_bounds = array<i64: 1, 128, 1>}]} {
    %c0_i32 = arith.constant 0 : i32
    %0 = arith.cmpi eq, %arg1, %c0_i32 : i32
    %1 = arith.extui %0 : i1 to i32
    %c0_i32_0 = arith.constant 0 : i32
    %2 = arith.cmpi ne, %1, %c0_i32_0 : i32
    scf.if %2 {
      %cst_15 = arith.constant 0.000000e+00 : f32
      %21 = vector.broadcast %cst_15 : f32 to vector<128x1xf32>
      %c0_16 = arith.constant 0 : index
      %c0_17 = arith.constant 0 : index
      %22 = vector.load %arg8[%c0_16, %c0_17] : memref<128x1xf32, #tpu.memory_space<vmem>>, vector<128x1xf32>
      tpu.vector_store %arg8[%c0_16, %c0_17], %21 {strides = array<i32>} : memref<128x1xf32, #tpu.memory_space<vmem>>, vector<128x1xf32>,
      %cst_18 = arith.constant 0.000000e+00 : f32
      %23 = vector.broadcast %cst_18 : f32 to vector<128x1xf32>
      %c0_19 = arith.constant 0 : index
      %c0_20 = arith.constant 0 : index
      %24 = vector.load %arg9[%c0_19, %c0_20] : memref<128x1xf32, #tpu.memory_space<vmem>>, vector<128x1xf32>
      tpu.vector_store %arg9[%c0_19, %c0_20], %23 {strides = array<i32>} : memref<128x1xf32, #tpu.memory_space<vmem>>, vector<128x1xf32>,
    } else {
    }
    %c0 = arith.constant 0 : index
    %c0_1 = arith.constant 0 : index
    %c0_2 = arith.constant 0 : index
    %3 = vector.load %arg2[%c0, %c0_1, %c0_2] : memref<1x4x256xf32, #tpu.memory_space<vmem>>, vector<1x4x256xf32>
    %4 = vector.shape_cast %3 : vector<1x4x256xf32> to vector<4x256xf32>
    %5 = arith.truncf %4 : vector<4x256xf32> to vector<4x256xbf16>
    %c0_3 = arith.constant 0 : index
    %c0_4 = arith.constant 0 : index
    %6 = vector.load %arg3[%c0_3, %c0_4] : memref<128x4xbf16, #tpu.memory_space<vmem>>, vector<128x4xbf16>
    %cst = arith.constant dense<0.000000e+00> : vector<128x256xf32>
    %7 = tpu.matmul %6, %5, %cst {dimension_numbers = #tpu.dot_dimension_numbers<[1], [0], [0], [1], [0, 0, 1, 1], [], []>} : vector<128x4xbf16>, vector<4x256xbf16>, vector<128x256xf32> -> vector<128x256xf32>
    %c0_5 = arith.constant 0 : index
    %c0_6 = arith.constant 0 : index
    %8 = vector.load %arg4[%c0_5, %c0_6] : memref<128x1xf32, #tpu.memory_space<vmem>>, vector<128x1xf32>
    %9 = vector.broadcast %8 : vector<128x1xf32> to vector<128x256xf32>
    %10 = arith.addf %7, %9 : vector<128x256xf32>
    %cst_7 = arith.constant 0.000000e+00 : f32
    %11 = vector.broadcast %cst_7 : f32 to vector<128x256xf32>
    %12 = arith.maximumf %10, %11 : vector<128x256xf32>
    %c0_8 = arith.constant 0 : index
    %c0_9 = arith.constant 0 : index
    %13 = vector.load %arg8[%c0_8, %c0_9] : memref<128x1xf32, #tpu.memory_space<vmem>>, vector<128x1xf32>
    %cst_10 = arith.constant dense<0xFF800000> : vector<128xf32>
    %14 = vector.multi_reduction <maximumf>, %12, %cst_10 [1] : vector<128x256xf32> to vector<128xf32>
    %15 = vector.shape_cast %14 : vector<128xf32> to vector<128x1xf32>
    %16 = arith.maximumf %13, %15 : vector<128x1xf32>
    %c0_11 = arith.constant 0 : index
    %c0_12 = arith.constant 0 : index
    %17 = vector.load %arg8[%c0_11, %c0_12] : memref<128x1xf32, #tpu.memory_space<vmem>>, vector<128x1xf32>
    tpu.vector_store %arg8[%c0_11, %c0_12], %16 {strides = array<i32>} : memref<128x1xf32, #tpu.memory_space<vmem>>, vector<128x1xf32>,
    %c0_i32_13 = arith.constant 0 : i32
    %18 = arith.cmpi eq, %arg1, %c0_i32_13 : i32
    %19 = arith.extui %18 : i1 to i32
    %c0_i32_14 = arith.constant 0 : i32
    %20 = arith.cmpi ne, %19, %c0_i32_14 : i32
    scf.if %20 {
      %c0_15 = arith.constant 0 : index
      %c0_16 = arith.constant 0 : index
      %21 = vector.load %arg8[%c0_15, %c0_16] : memref<128x1xf32, #tpu.memory_space<vmem>>, vector<128x1xf32>
      %c0_17 = arith.constant 0 : index
      %c0_18 = arith.constant 0 : index
      %22 = vector.load %arg5[%c0_17, %c0_18] : memref<128x128xbf16, #tpu.memory_space<vmem>>, vector<128x128xbf16>
      %23 = arith.extf %22 : vector<128x128xbf16> to vector<128x128xf32>
      %cst_19 = arith.constant dense<0.000000e+00> : vector<128x1xf32>
      %24 = tpu.matmul %23, %21, %cst_19 {dimension_numbers = #tpu.dot_dimension_numbers<[1], [0], [0], [1], [0, 0, 1, 1], [], []>} : vector<128x128xf32>, vector<128x1xf32>, vector<128x1xf32> -> vector<128x1xf32>
      %c0_20 = arith.constant 0 : index
      %c0_21 = arith.constant 0 : index
      %25 = vector.load %arg6[%c0_20, %c0_21] : memref<128x1xf32, #tpu.memory_space<vmem>>, vector<128x1xf32>
      %26 = arith.addf %24, %25 : vector<128x1xf32>
      %cst_22 = arith.constant 5.000000e-01 : f32
      %27 = vector.broadcast %cst_22 : f32 to vector<128x1xf32>
      %28 = arith.mulf %27, %26 : vector<128x1xf32>
      %29 = math.tanh %28 : vector<128x1xf32>
      %cst_23 = arith.constant 1.000000e+00 : f32
      %30 = vector.broadcast %cst_23 : f32 to vector<128x1xf32>
      %31 = arith.addf %29, %30 : vector<128x1xf32>
      %cst_24 = arith.constant 5.000000e-01 : f32
      %32 = vector.broadcast %cst_24 : f32 to vector<128x1xf32>
      %33 = arith.mulf %32, %31 : vector<128x1xf32>
      %34 = vector.shape_cast %33 : vector<128x1xf32> to vector<1x128x1xf32>
      %c0_25 = arith.constant 0 : index
      %c0_26 = arith.constant 0 : index
      %c0_27 = arith.constant 0 : index
      %35 = vector.load %arg7[%c0_25, %c0_26, %c0_27] : memref<1x128x1xf32, #tpu.memory_space<vmem>>, vector<1x128x1xf32>
      tpu.vector_store %arg7[%c0_25, %c0_26, %c0_27], %34 {strides = array<i32>} : memref<1x128x1xf32, #tpu.memory_space<vmem>>, vector<1x128x1xf32>,
    } else {
    }
    return
  }
  func.func @transform_0(%arg0: i32, %arg1: i32) -> (i32, i32, i32) {
    %c0_i32 = arith.constant 0 : i32
    %c0_i32_0 = arith.constant 0 : i32
    return %arg0, %c0_i32, %arg1 : i32, i32, i32
  }
  func.func @transform_1(%arg0: i32, %arg1: i32) -> (i32, i32) {
    %c0_i32 = arith.constant 0 : i32
    %c0_i32_0 = arith.constant 0 : i32
    %c0_i32_1 = arith.constant 0 : i32
    return %c0_i32, %c0_i32_0 : i32, i32
  }
  func.func @transform_2(%arg0: i32, %arg1: i32) -> (i32, i32) {
    %c0_i32 = arith.constant 0 : i32
    %c0_i32_0 = arith.constant 0 : i32
    %c0_i32_1 = arith.constant 0 : i32
    return %c0_i32, %c0_i32_0 : i32, i32
  }
  func.func @transform_3(%arg0: i32, %arg1: i32) -> (i32, i32) {
    %c0_i32 = arith.constant 0 : i32
    %c0_i32_0 = arith.constant 0 : i32
    %c0_i32_1 = arith.constant 0 : i32
    return %c0_i32, %c0_i32_0 : i32, i32
  }
  func.func @transform_4(%arg0: i32, %arg1: i32) -> (i32, i32) {
    %c0_i32 = arith.constant 0 : i32
    %c0_i32_0 = arith.constant 0 : i32
    %c0_i32_1 = arith.constant 0 : i32
    return %c0_i32, %c0_i32_0 : i32, i32
  }
  func.func @transform_5(%arg0: i32, %arg1: i32) -> (i32, i32, i32) {
    %c0_i32 = arith.constant 0 : i32
    %c0_i32_0 = arith.constant 0 : i32
    %c0_i32_1 = arith.constant 0 : i32
    return %arg0, %c0_i32, %c0_i32_0 : i32, i32, i32
  }
}

</mosaic_0001>

<llo_original>
// kernel: densenet_forward.1
$region0: #{densenet_forward.1}
  #allocation0 [shape = 'u32[]', space=smem, size = 0x4, offset = 0x4, fixed_abs, tag = 'smem constant byte address 0x4 - core index']
  #allocation1 [shape = 'u32[144,128]{1,0:T(1,128)}', space=vmem, size = 0x12000, scoped, tag = 'internal scratch']
  #allocation2 [shape = 'f32[128,1]{1,0:T(8,128)}', space=vmem, size = 0x10000, scoped, tag = 'scratch operand']
  #allocation3 [shape = 'f32[128,1]{1,0:T(8,128)}', space=vmem, size = 0x10000, scoped, tag = 'scratch operand']
  %s0 = inlined_call_operand.vmem [shape: f32[2,4,256], index: 0, kind: input, shape index: {}]
  %s1 = inlined_call_operand.vmem [shape: bf16[128,4], index: 1, kind: input, shape index: {}]
  %s2 = inlined_call_operand.vmem [shape: f32[128,1], index: 2, kind: input, shape index: {}]
  %s3 = inlined_call_operand.vmem [shape: bf16[128,128], index: 3, kind: input, shape index: {}]
  %s4 = inlined_call_operand.vmem [shape: f32[128,1], index: 4, kind: input, shape index: {}]
  %s5 = inlined_call_operand.vmem [shape: f32[2,128,1], index: 5, kind: output, shape index: {}]
  %s6 = sld [smem:[#allocation0]]
  $region61: #{densenet_forward.1} parent=0
    _
  %s8 = ssub.s32 1, %s6
  %s9 = scalar_select 0, %s8, %s6
  loop: start=0, step=1, limit=4
  $region2: #{densenet_forward.1} parent=0 // loop_pre_header
    _
  $region3: #{densenet_forward.1} parent=0 // loop_header
    %s11 = sphi 0, %s15
    %p12 = scmp.ge.s32.totalorder %s11, 4
    %s18 = sphi 0, %s30
    %s19 = sphi 0, %s26
    %s20 = sphi 0, %s18
    %s21 = sphi 0, %s19
    %s22 = sphi 0, %s20
    %s23 = sphi 0, %s21
    %s35 = sphi 0, %s37
    %s38 = sphi 0, %s35
    %s39 = sphi 0, %s38
    %s55 = sphi 0, %s39
    %s59 = sphi 0, %s59
    %s61 = sphi 0, %s59
    %s62 = sphi 0, %s61
    %s76 = sphi 0, %s62
    %s80 = sphi 0, %s80
    %s82 = sphi 0, %s80
    %s83 = sphi 0, %s82
    %s97 = sphi 0, %s83
    %s101 = sphi 0, %s101
    %s103 = sphi 0, %s101
    %s104 = sphi 0, %s103
    %s118 = sphi 0, %s104
    %s122 = sphi 0, %s122
    %s124 = sphi 0, %s122
    %s125 = sphi 0, %s124
    %s139 = sphi 0, %s125
    %s145 = sphi 0, %s147
    %s148 = sphi 0, %s145
    %s149 = sphi 0, %s148
    %s165 = sphi 0, %s149
  $region4: #{densenet_forward.1} parent=0 // loop_header_branch
    %14 = sbr.rel (%p12) target = $region8
  $region5: #{densenet_forward.1} parent=0 // loop_body
    %s16 = ssub.s32 %s11, 1
    %s17 = ssub.s32 %s11, 2
    %s24 = sadd.s32 1, %s19
    %p25 = scmp.ge.s32.totalorder %s24, 1
    %s26 = scalar_select %p25, 0, %s24
    %s27 = sadd.s32 1, %s18
    %s28 = scalar_select %p25, %s27, %s18
    %p29 = scmp.ge.s32.totalorder %s28, 2
    %s30 = scalar_select %p29, 0, %s28
    %s31 = ssub.s32 %s18, %s30
    %s32 = ssub.s32 %s19, %s26
    %s33 = sor.u32 %s31, %s32
    %p34 = scmp.eq.s32.totalorder %s33, 0
    %s36 = sadd.s32 %s35, 1
    %s37 = scalar_select %p34, %s35, %s36
    %p40 = pneg %p34
    %p41 = scmp.eq.s32.totalorder %s11, 1
    %p42 = por %p40, %p41
    %p43 = scmp.ne.s32.totalorder %s35, %s38
    %p44 = scmp.eq.s32.totalorder %s11, 0
    %p45 = por %p43, %p44
    %p46 = scmp.ne.s32.totalorder %s35, %s38
    %p47 = scmp.eq.s32.totalorder %s16, 1
    %p48 = por %p46, %p47
    %p49 = scmp.ne.s32.totalorder %s38, %s39
    %p50 = scmp.eq.s32.totalorder %s16, 0
    %p51 = por %p49, %p50
    %p52 = scmp.ne.s32.totalorder %s38, %s39
    %p53 = scmp.eq.s32.totalorder %s17, 1
    %p54 = por %p52, %p53
    %p56 = scmp.ne.s32.totalorder %s39, %s55
    %p57 = scmp.eq.s32.totalorder %s17, 0
    %p58 = por %p56, %p57
    %s60 = sadd.s32 %s59, 1
    %p63 = scmp.eq.s32.totalorder %s11, 1
    %p64 = scmp.ne.s32.totalorder %s59, %s61
    %p65 = scmp.eq.s32.totalorder %s11, 0
    %p66 = por %p64, %p65
    %p67 = scmp.ne.s32.totalorder %s59, %s61
    %p68 = scmp.eq.s32.totalorder %s16, 1
    %p69 = por %p67, %p68
    %p70 = scmp.ne.s32.totalorder %s61, %s62
    %p71 = scmp.eq.s32.totalorder %s16, 0
    %p72 = por %p70, %p71
    %p73 = scmp.ne.s32.totalorder %s61, %s62
    %p74 = scmp.eq.s32.totalorder %s17, 1
    %p75 = por %p73, %p74
    %p77 = scmp.ne.s32.totalorder %s62, %s76
    %p78 = scmp.eq.s32.totalorder %s17, 0
    %p79 = por %p77, %p78
    %s81 = sadd.s32 %s80, 1
    %p84 = scmp.eq.s32.totalorder %s11, 1
    %p85 = scmp.ne.s32.totalorder %s80, %s82
    %p86 = scmp.eq.s32.totalorder %s11, 0
    %p87 = por %p85, %p86
    %p88 = scmp.ne.s32.totalorder %s80, %s82
    %p89 = scmp.eq.s32.totalorder %s16, 1
    %p90 = por %p88, %p89
    %p91 = scmp.ne.s32.totalorder %s82, %s83
    %p92 = scmp.eq.s32.totalorder %s16, 0
    %p93 = por %p91, %p92
    %p94 = scmp.ne.s32.totalorder %s82, %s83
    %p95 = scmp.eq.s32.totalorder %s17, 1
    %p96 = por %p94, %p95
    %p98 = scmp.ne.s32.totalorder %s83, %s97
    %p99 = scmp.eq.s32.totalorder %s17, 0
    %p100 = por %p98, %p99
    %s102 = sadd.s32 %s101, 1
    %p105 = scmp.eq.s32.totalorder %s11, 1
    %p106 = scmp.ne.s32.totalorder %s101, %s103
    %p107 = scmp.eq.s32.totalorder %s11, 0
    %p108 = por %p106, %p107
    %p109 = scmp.ne.s32.totalorder %s101, %s103
    %p110 = scmp.eq.s32.totalorder %s16, 1
    %p111 = por %p109, %p110
    %p112 = scmp.ne.s32.totalorder %s103, %s104
    %p113 = scmp.eq.s32.totalorder %s16, 0
    %p114 = por %p112, %p113
    %p115 = scmp.ne.s32.totalorder %s103, %s104
    %p116 = scmp.eq.s32.totalorder %s17, 1
    %p117 = por %p115, %p116
    %p119 = scmp.ne.s32.totalorder %s104, %s118
    %p120 = scmp.eq.s32.totalorder %s17, 0
    %p121 = por %p119, %p120
    %s123 = sadd.s32 %s122, 1
    %p126 = scmp.eq.s32.totalorder %s11, 1
    %p127 = scmp.ne.s32.totalorder %s122, %s124
    %p128 = scmp.eq.s32.totalorder %s11, 0
    %p129 = por %p127, %p128
    %p130 = scmp.ne.s32.totalorder %s122, %s124
    %p131 = scmp.eq.s32.totalorder %s16, 1
    %p132 = por %p130, %p131
    %p133 = scmp.ne.s32.totalorder %s124, %s125
    %p134 = scmp.eq.s32.totalorder %s16, 0
    %p135 = por %p133, %p134
    %p136 = scmp.ne.s32.totalorder %s124, %s125
    %p137 = scmp.eq.s32.totalorder %s17, 1
    %p138 = por %p136, %p137
    %p140 = scmp.ne.s32.totalorder %s125, %s139
    %p141 = scmp.eq.s32.totalorder %s17, 0
    %p142 = por %p140, %p141
    %s143 = ssub.s32 %s18, %s30
    %p144 = scmp.eq.s32.totalorder %s143, 0
    %s146 = sadd.s32 %s145, 1
    %s147 = scalar_select %p144, %s145, %s146
    %p150 = pneg %p144
    %p151 = scmp.eq.s32.totalorder %s11, 1
    %p152 = por %p150, %p151
    %p153 = scmp.ne.s32.totalorder %s145, %s148
    %p154 = scmp.eq.s32.totalorder %s11, 0
    %p155 = por %p153, %p154
    %p156 = scmp.ne.s32.totalorder %s145, %s148
    %p157 = scmp.eq.s32.totalorder %s16, 1
    %p158 = por %p156, %p157
    %p159 = scmp.ne.s32.totalorder %s148, %s149
    %p160 = scmp.eq.s32.totalorder %s16, 0
    %p161 = por %p159, %p160
    %p162 = scmp.ne.s32.totalorder %s148, %s149
    %p163 = scmp.eq.s32.totalorder %s17, 1
    %p164 = por %p162, %p163
    %p166 = scmp.ne.s32.totalorder %s149, %s165
    %p167 = scmp.eq.s32.totalorder %s17, 0
    %p168 = por %p166, %p167
    %p169 = scmp.le.s32.totalorder 1, %s11
    %p170 = scmp.lt.s32.totalorder %s11, 3
    %p171 = pnand %p169, %p170
    %p172 = pneg %p171
    // Predicated region
    $region9: #{densenet_forward.1} parent=5 // pred_check
      _
    $region10: #{densenet_forward.1} parent=5 // pred_check_branch
      %174 = sbr.rel (%p171) target = $region12
    $region11: #{densenet_forward.1} parent=5 // pred_region
      %s175 = ssub.s32 %s11, 1
      // Predicated region
      $region13: #{densenet_forward.1} parent=11 // pred_check
        %p176 = pneg %p72
      $region14: #{densenet_forward.1} parent=11 // pred_check_branch
        %178 = sbr.rel (%p176) target = $region16
      $region15: #{densenet_forward.1} parent=11 // pred_region
        _
      $region16: #{densenet_forward.1} parent=11 // pred_fallthru
        _
      // Predicated region
      $region17: #{densenet_forward.1} parent=11 // pred_check
        %p179 = pneg %p93
      $region18: #{densenet_forward.1} parent=11 // pred_check_branch
        %181 = sbr.rel (%p179) target = $region20
      $region19: #{densenet_forward.1} parent=11 // pred_region
        _
      $region20: #{densenet_forward.1} parent=11 // pred_fallthru
        _
      // Predicated region
      $region21: #{densenet_forward.1} parent=11 // pred_check
        %p182 = pneg %p114
      $region22: #{densenet_forward.1} parent=11 // pred_check_branch
        %184 = sbr.rel (%p182) target = $region24
      $region23: #{densenet_forward.1} parent=11 // pred_region
        _
      $region24: #{densenet_forward.1} parent=11 // pred_fallthru
        _
      // Predicated region
      $region25: #{densenet_forward.1} parent=11 // pred_check
        %p185 = pneg %p135
      $region26: #{densenet_forward.1} parent=11 // pred_check_branch
        %187 = sbr.rel (%p185) target = $region28
      $region27: #{densenet_forward.1} parent=11 // pred_region
        _
      $region28: #{densenet_forward.1} parent=11 // pred_fallthru
        _
    $region12: #{densenet_forward.1} parent=5 // pred_fallthru
      _
    %p188 = scmp.lt.s32.totalorder %s11, 2
    // Predicated region
    $region29: #{densenet_forward.1} parent=5 // pred_check
      %p189 = pneg %p188
    $region30: #{densenet_forward.1} parent=5 // pred_check_branch
      %191 = sbr.rel (%p189) target = $region32
    $region31: #{densenet_forward.1} parent=5 // pred_region
      // Predicated region
      $region33: #{densenet_forward.1} parent=31 // pred_check
        %p192 = pneg %p45
      $region34: #{densenet_forward.1} parent=31 // pred_check_branch
        %194 = sbr.rel (%p192) target = $region36
      $region35: #{densenet_forward.1} parent=31 // pred_region
        %s195 = smul.u32 2, %s19
        %p196 = scmp.lt.s32.totalorder %s18, 1
        %s197 = scalar_select %p196, %s18, 1
        %p198 = scmp.lt.s32.totalorder %s195, 1
        %s199 = scalar_select %p198, %s195, 1
        %s200 = smul.addr %s197, 2
        %s201 = sadd.s32 %s199, %s200
        %s202 = smul.addr %s201, 4
        %s203 = scalar_lea.vmem %s0, %s202
        %s204 = smul.u32 2, %s19
      $region36: #{densenet_forward.1} parent=31 // pred_fallthru
        _
    $region32: #{densenet_forward.1} parent=5 // pred_fallthru
      _
    %p205 = scmp.le.s32.totalorder 1, %s11
    %p206 = scmp.lt.s32.totalorder %s11, 3
    %p207 = pnand %p205, %p206
    %p208 = pneg %p207
    // Predicated region
    $region37: #{densenet_forward.1} parent=5 // pred_check
      _
    $region38: #{densenet_forward.1} parent=5 // pred_check_branch
      %210 = sbr.rel (%p207) target = $region40
    $region39: #{densenet_forward.1} parent=5 // pred_region
      %s211 = ssub.s32 %s11, 1
      %s212 = smul.u32 2, %s21
      %p213 = scmp.lt.s32.totalorder %s20, 1
      %s214 = scalar_select %p213, %s20, 1
      %p215 = scmp.lt.s32.totalorder %s212, 1
      %s216 = scalar_select %p215, %s212, 1
      %s217 = smul.addr %s214, 2
      %s218 = sadd.s32 %s216, %s217
      %s219 = smul.addr %s218, 4
      %s220 = scalar_lea.vmem %s0, %s219
      %p221 = pneg %p51
      %p222 = pneg %p48
      %p223 = pneg %p72
      %p224 = pneg %p69
      %p225 = pneg %p93
      %p226 = pneg %p90
      %p227 = pneg %p114
      %p228 = pneg %p111
      %p229 = pneg %p135
      %p230 = pneg %p132
      %p231 = pneg %p161
      %p232 = pneg %p158
      %p233 = scmp.lt.s32.totalorder %s20, 1
      %s234 = scalar_select %p233, %s20, 1
      %s235 = smul.addr %s234, 16
      %s236 = smul.addr %s235, 8
      %s237 = scalar_lea.vmem %s5, %s236
      %s238 = smul.u32 2, %s21
      %p239 = scmp.lt.s32.totalorder %s20, 1
      %s240 = scalar_select %p239, %s20, 1
      %p241 = scmp.lt.s32.totalorder %s238, 1
      %s242 = scalar_select %p241, %s238, 1
      %s243 = smul.addr %s240, 2
      %s244 = sadd.s32 %s242, %s243
      %s245 = smul.addr %s244, 4
      %s246 = scalar_lea.vmem %s0, %s245
      %s247 = smul.u32 2, %s21
      %p248 = scmp.lt.s32.totalorder %s20, 1
      %s249 = scalar_select %p248, %s20, 1
      %s250 = smul.addr %s249, 16
      %s251 = smul.addr %s250, 8
      %s252 = scalar_lea.vmem %s5, %s251
      %p254 = scmp.eq.s32.totalorder %s21, 0
      // Predicated region
      $region41: #{densenet_forward.1} parent=39 // pred_check
        %p255 = pneg %p254
      $region42: #{densenet_forward.1} parent=39 // pred_check_branch
        %257 = sbr.rel (%p255) target = $region44
      $region43: #{densenet_forward.1} parent=39 // pred_region
        %vm258 = vcmask 7168
        %259 = vst.msk [vmem:[#allocation2] sm:$0xff] %vm258, 0.0
        %260 = vst.msk [vmem:[#allocation2 + $0x8] sm:$0xff] %vm258, 0.0
        %261 = vst.msk [vmem:[#allocation2 + $0x10] sm:$0xff] %vm258, 0.0
        %262 = vst.msk [vmem:[#allocation2 + $0x18] sm:$0xff] %vm258, 0.0
        %263 = vst.msk [vmem:[#allocation2 + $0x20] sm:$0xff] %vm258, 0.0
        %264 = vst.msk [vmem:[#allocation2 + $0x28] sm:$0xff] %vm258, 0.0
        %265 = vst.msk [vmem:[#allocation2 + $0x30] sm:$0xff] %vm258, 0.0
        %266 = vst.msk [vmem:[#allocation2 + $0x38] sm:$0xff] %vm258, 0.0
        %267 = vst.msk [vmem:[#allocation2 + $0x40] sm:$0xff] %vm258, 0.0
        %268 = vst.msk [vmem:[#allocation2 + $0x48] sm:$0xff] %vm258, 0.0
        %269 = vst.msk [vmem:[#allocation2 + $0x50] sm:$0xff] %vm258, 0.0
        %270 = vst.msk [vmem:[#allocation2 + $0x58] sm:$0xff] %vm258, 0.0
        %271 = vst.msk [vmem:[#allocation2 + $0x60] sm:$0xff] %vm258, 0.0
        %272 = vst.msk [vmem:[#allocation2 + $0x68] sm:$0xff] %vm258, 0.0
        %273 = vst.msk [vmem:[#allocation2 + $0x70] sm:$0xff] %vm258, 0.0
        %274 = vst.msk [vmem:[#allocation2 + $0x78] sm:$0xff] %vm258, 0.0
        %275 = vst.msk [vmem:[#allocation3] sm:$0xff] %vm258, 0.0
        %276 = vst.msk [vmem:[#allocation3 + $0x8] sm:$0xff] %vm258, 0.0
        %277 = vst.msk [vmem:[#allocation3 + $0x10] sm:$0xff] %vm258, 0.0
        %278 = vst.msk [vmem:[#allocation3 + $0x18] sm:$0xff] %vm258, 0.0
        %279 = vst.msk [vmem:[#allocation3 + $0x20] sm:$0xff] %vm258, 0.0
        %280 = vst.msk [vmem:[#allocation3 + $0x28] sm:$0xff] %vm258, 0.0
        %281 = vst.msk [vmem:[#allocation3 + $0x30] sm:$0xff] %vm258, 0.0
        %282 = vst.msk [vmem:[#allocation3 + $0x38] sm:$0xff] %vm258, 0.0
        %283 = vst.msk [vmem:[#allocation3 + $0x40] sm:$0xff] %vm258, 0.0
        %284 = vst.msk [vmem:[#allocation3 + $0x48] sm:$0xff] %vm258, 0.0
        %285 = vst.msk [vmem:[#allocation3 + $0x50] sm:$0xff] %vm258, 0.0
        %286 = vst.msk [vmem:[#allocation3 + $0x58] sm:$0xff] %vm258, 0.0
        %287 = vst.msk [vmem:[#allocation3 + $0x60] sm:$0xff] %vm258, 0.0
        %288 = vst.msk [vmem:[#allocation3 + $0x68] sm:$0xff] %vm258, 0.0
        %289 = vst.msk [vmem:[#allocation3 + $0x70] sm:$0xff] %vm258, 0.0
        %290 = vst.msk [vmem:[#allocation3 + $0x78] sm:$0xff] %vm258, 0.0
      $region44: #{densenet_forward.1} parent=39 // pred_fallthru
        _
      %v291 = vld [vmem:[%s246] sm:$0xff]
      %v293 = vcombine.high %v291, %v291
      %v295 = vpack.c.bf16 %v291, %v291
      %v296 = vpack.c.bf16 %v293, %v293
      %v297 = vld [vmem:[%s1] sm:$0xf]
      %v298 = vld [vmem:[%s1 + $0x4] sm:$0xf]
      %v299 = vld [vmem:[%s1 + $0x8] sm:$0xf]
      %v300 = vld [vmem:[%s1 + $0xc] sm:$0xf]
      %v301 = vld [vmem:[%s1 + $0x10] sm:$0xf]
      %v302 = vld [vmem:[%s1 + $0x14] sm:$0xf]
      %v303 = vld [vmem:[%s1 + $0x18] sm:$0xf]
      %v304 = vld [vmem:[%s1 + $0x1c] sm:$0xf]
      %v305 = vld [vmem:[%s1 + $0x20] sm:$0xf]
      %v306 = vld [vmem:[%s1 + $0x24] sm:$0xf]
      %v307 = vld [vmem:[%s1 + $0x28] sm:$0xf]
      %v308 = vld [vmem:[%s1 + $0x2c] sm:$0xf]
      %v309 = vld [vmem:[%s1 + $0x30] sm:$0xf]
      %v310 = vld [vmem:[%s1 + $0x34] sm:$0xf]
      %v311 = vld [vmem:[%s1 + $0x38] sm:$0xf]
      %v312 = vld [vmem:[%s1 + $0x3c] sm:$0xf]
      %v313 = vld [vmem:[%s2] sm:$0xff]
      %v314 = vld [vmem:[%s2 + $0x8] sm:$0xff]
      %v315 = vld [vmem:[%s2 + $0x10] sm:$0xff]
      %v316 = vld [vmem:[%s2 + $0x18] sm:$0xff]
      %v317 = vld [vmem:[%s2 + $0x20] sm:$0xff]
      %v318 = vld [vmem:[%s2 + $0x28] sm:$0xff]
      %v319 = vld [vmem:[%s2 + $0x30] sm:$0xff]
      %v320 = vld [vmem:[%s2 + $0x38] sm:$0xff]
      %v321 = vld [vmem:[%s2 + $0x40] sm:$0xff]
      %v322 = vld [vmem:[%s2 + $0x48] sm:$0xff]
      %v323 = vld [vmem:[%s2 + $0x50] sm:$0xff]
      %v324 = vld [vmem:[%s2 + $0x58] sm:$0xff]
      %v325 = vld [vmem:[%s2 + $0x60] sm:$0xff]
      %v326 = vld [vmem:[%s2 + $0x68] sm:$0xff]
      %v327 = vld [vmem:[%s2 + $0x70] sm:$0xff]
      %v328 = vld [vmem:[%s2 + $0x78] sm:$0xff]
      %330 = vset.pattern.permute.xlu0 0
      %331 = vperm.xlu0 %330, %v313
      %v332 = vpop.permute.xlu0 %331
      %335 = vset.pattern.permute.xlu0 0
      %336 = vperm.xlu0 %335, %v314
      %v337 = vpop.permute.xlu0 %336
      %340 = vset.pattern.permute.xlu0 0
      %341 = vperm.xlu0 %340, %v315
      %v342 = vpop.permute.xlu0 %341
      %345 = vset.pattern.permute.xlu0 0
      %346 = vperm.xlu0 %345, %v316
      %v347 = vpop.permute.xlu0 %346
      %350 = vset.pattern.permute.xlu0 0
      %351 = vperm.xlu0 %350, %v317
      %v352 = vpop.permute.xlu0 %351
      %355 = vset.pattern.permute.xlu0 0
      %356 = vperm.xlu0 %355, %v318
      %v357 = vpop.permute.xlu0 %356
      %360 = vset.pattern.permute.xlu0 0
      %361 = vperm.xlu0 %360, %v319
      %v362 = vpop.permute.xlu0 %361
      %365 = vset.pattern.permute.xlu0 0
      %366 = vperm.xlu0 %365, %v320
      %v367 = vpop.permute.xlu0 %366
      %370 = vset.pattern.permute.xlu0 0
      %371 = vperm.xlu0 %370, %v321
      %v372 = vpop.permute.xlu0 %371
      %375 = vset.pattern.permute.xlu0 0
      %376 = vperm.xlu0 %375, %v322
      %v377 = vpop.permute.xlu0 %376
      %380 = vset.pattern.permute.xlu0 0
      %381 = vperm.xlu0 %380, %v323
      %v382 = vpop.permute.xlu0 %381
      %385 = vset.pattern.permute.xlu0 0
      %386 = vperm.xlu0 %385, %v324
      %v387 = vpop.permute.xlu0 %386
      %390 = vset.pattern.permute.xlu0 0
      %391 = vperm.xlu0 %390, %v325
      %v392 = vpop.permute.xlu0 %391
      %395 = vset.pattern.permute.xlu0 0
      %396 = vperm.xlu0 %395, %v326
      %v397 = vpop.permute.xlu0 %396
      %400 = vset.pattern.permute.xlu0 0
      %401 = vperm.xlu0 %400, %v327
      %v402 = vpop.permute.xlu0 %401
      %405 = vset.pattern.permute.xlu0 0
      %406 = vperm.xlu0 %405, %v328
      %v407 = vpop.permute.xlu0 %406
      %v425 = vunpack.c.l.b16 %v297
      %v426 = vunpack.c.l.b16 %v298
      %v427 = vunpack.c.l.b16 %v299
      %v428 = vunpack.c.l.b16 %v300
      %v429 = vunpack.c.l.b16 %v301
      %v430 = vunpack.c.l.b16 %v302
      %v431 = vunpack.c.l.b16 %v303
      %v432 = vunpack.c.l.b16 %v304
      %v433 = vunpack.c.l.b16 %v305
      %v434 = vunpack.c.l.b16 %v306
      %v435 = vunpack.c.l.b16 %v307
      %v436 = vunpack.c.l.b16 %v308
      %v437 = vunpack.c.l.b16 %v309
      %v438 = vunpack.c.l.b16 %v310
      %v439 = vunpack.c.l.b16 %v311
      %v440 = vunpack.c.l.b16 %v312
      %v441 = vpack.c.b16 %v426, %v425
      %v442 = vpack.c.b16 %v428, %v427
      %v443 = vpack.c.b16 %v430, %v429
      %v444 = vpack.c.b16 %v432, %v431
      %v445 = vpack.c.b16 %v434, %v433
      %v446 = vpack.c.b16 %v436, %v435
      %v447 = vpack.c.b16 %v438, %v437
      %v448 = vpack.c.b16 %v440, %v439
      %vm449 = vcmask 31744
      %v451 = vsel %vm449, %v441, 0
      %v454 = vsel %vm449, %v442, 0
      %v457 = vsel %vm449, %v443, 0
      %v460 = vsel %vm449, %v444, 0
      %v463 = vsel %vm449, %v445, 0
      %v466 = vsel %vm449, %v446, 0
      %v469 = vsel %vm449, %v447, 0
      %v472 = vsel %vm449, %v448, 0
      %vm474 = vcmask 1041408
      %v476 = vsel %vm474, %v295, 0
      %v479 = vsel %vm474, %v296, 0
      %481 = vmatprep.subr.bf16.mxu0 %v479
      %482 = vmatpush1.bf16.msra.mxu0 %v476
      %483 = vmatprep.subr.bf16.mxu0 0
      %484 = vmatpush1.bf16.msra.mxu0 0
      %485 = vmatprep.subr.bf16.mxu0 0
      %486 = vmatpush1.bf16.msra.mxu0 0
      %487 = vmatprep.subr.bf16.mxu0 0
      %488 = vmatpush1.bf16.msra.mxu0 0
      %489 = vmatprep.subr.bf16.mxu0 0
      %490 = vmatpush1.bf16.msra.mxu0 0
      %491 = vmatprep.subr.bf16.mxu0 0
      %492 = vmatpush1.bf16.msra.mxu0 0
      %493 = vmatprep.subr.bf16.mxu0 0
      %494 = vmatpush1.bf16.msra.mxu0 0
      %495 = vmatprep.subr.bf16.mxu0 0
      %496 = vmatpush1.bf16.msra.mxu0 0
      %497 = vmatprep.subr.bf16.mxu0 0
      %498 = vmatpush1.bf16.msra.mxu0 0
      %499 = vmatprep.subr.bf16.mxu0 0
      %500 = vmatpush1.bf16.msra.mxu0 0
      %501 = vmatprep.subr.bf16.mxu0 0
      %502 = vmatpush1.bf16.msra.mxu0 0
      %503 = vmatprep.subr.bf16.mxu0 0
      %504 = vmatpush1.bf16.msra.mxu0 0
      %505 = vmatprep.subr.bf16.mxu0 0
      %506 = vmatpush1.bf16.msra.mxu0 0
      %507 = vmatprep.subr.bf16.mxu0 0
      %508 = vmatpush1.bf16.msra.mxu0 0
      %509 = vmatprep.subr.bf16.mxu0 0
      %510 = vmatpush1.bf16.msra.mxu0 0
      %511 = vmatprep.subr.bf16.mxu0 0
      %512 = vmatpush1.bf16.msra.mxu0 0
      %513 = vmatprep.mubr.bf16.mxu0 0
      %514 = vmatmul.mubr.bf16.gmra.mrb[0].mxu0 %v451
      %v515 = vpop.f32.mrb[0].mxu0
      %v516 = vadd.f32 %v332, %v515
      %v517 = vpop.f32.mrb[0].mxu0
      %v518 = vadd.f32 %v332, %v517
      %v519 = vpop.f32.mrb[0].mxu0
      %v520 = vadd.f32 %v337, %v519
      %v521 = vpop.f32.mrb[0].mxu0
      %v522 = vadd.f32 %v337, %v521
      %523 = vmatprep.mubr.bf16.mxu0 0
      %524 = vmatmul.mubr.bf16.gmra.mrb[0].mxu0 %v454
      %v525 = vpop.f32.mrb[0].mxu0
      %v526 = vadd.f32 %v342, %v525
      %v527 = vpop.f32.mrb[0].mxu0
      %v528 = vadd.f32 %v342, %v527
      %v529 = vpop.f32.mrb[0].mxu0
      %v530 = vadd.f32 %v347, %v529
      %v531 = vpop.f32.mrb[0].mxu0
      %v532 = vadd.f32 %v347, %v531
      %533 = vmatprep.mubr.bf16.mxu0 0
      %534 = vmatmul.mubr.bf16.gmra.mrb[0].mxu0 %v457
      %v535 = vpop.f32.mrb[0].mxu0
      %v536 = vadd.f32 %v352, %v535
      %v537 = vpop.f32.mrb[0].mxu0
      %v538 = vadd.f32 %v352, %v537
      %v539 = vpop.f32.mrb[0].mxu0
      %v540 = vadd.f32 %v357, %v539
      %v541 = vpop.f32.mrb[0].mxu0
      %v542 = vadd.f32 %v357, %v541
      %543 = vmatprep.mubr.bf16.mxu0 0
      %544 = vmatmul.mubr.bf16.gmra.mrb[0].mxu0 %v460
      %v545 = vpop.f32.mrb[0].mxu0
      %v546 = vadd.f32 %v362, %v545
      %v547 = vpop.f32.mrb[0].mxu0
      %v548 = vadd.f32 %v362, %v547
      %v549 = vpop.f32.mrb[0].mxu0
      %v550 = vadd.f32 %v367, %v549
      %v551 = vpop.f32.mrb[0].mxu0
      %v552 = vadd.f32 %v367, %v551
      %553 = vmatprep.mubr.bf16.mxu0 0
      %554 = vmatmul.mubr.bf16.gmra.mrb[0].mxu0 %v463
      %v555 = vpop.f32.mrb[0].mxu0
      %v556 = vadd.f32 %v372, %v555
      %v557 = vpop.f32.mrb[0].mxu0
      %v558 = vadd.f32 %v372, %v557
      %v559 = vpop.f32.mrb[0].mxu0
      %v560 = vadd.f32 %v377, %v559
      %v561 = vpop.f32.mrb[0].mxu0
      %v562 = vadd.f32 %v377, %v561
      %563 = vmatprep.mubr.bf16.mxu0 0
      %564 = vmatmul.mubr.bf16.gmra.mrb[0].mxu0 %v466
      %v565 = vpop.f32.mrb[0].mxu0
      %v566 = vadd.f32 %v382, %v565
      %v567 = vpop.f32.mrb[0].mxu0
      %v568 = vadd.f32 %v382, %v567
      %v569 = vpop.f32.mrb[0].mxu0
      %v570 = vadd.f32 %v387, %v569
      %v571 = vpop.f32.mrb[0].mxu0
      %v572 = vadd.f32 %v387, %v571
      %573 = vmatprep.mubr.bf16.mxu0 0
      %574 = vmatmul.mubr.bf16.gmra.mrb[0].mxu0 %v469
      %v575 = vpop.f32.mrb[0].mxu0
      %v576 = vadd.f32 %v392, %v575
      %v577 = vpop.f32.mrb[0].mxu0
      %v578 = vadd.f32 %v392, %v577
      %v579 = vpop.f32.mrb[0].mxu0
      %v580 = vadd.f32 %v397, %v579
      %v581 = vpop.f32.mrb[0].mxu0
      %v582 = vadd.f32 %v397, %v581
      %583 = vmatprep.mubr.bf16.mxu0 0
      %584 = vmatmul.mubr.bf16.gmra.mrb[0].mxu0 %v472
      %v585 = vpop.f32.mrb[0].mxu0
      %v586 = vadd.f32 %v402, %v585
      %v587 = vpop.f32.mrb[0].mxu0
      %v588 = vadd.f32 %v402, %v587
      %v589 = vpop.f32.mrb[0].mxu0
      %v590 = vadd.f32 %v407, %v589
      %v591 = vpop.f32.mrb[0].mxu0
      %v592 = vadd.f32 %v407, %v591
      %593 = vdwg.mxu0
      %v594 = vmax.f32 %v516, 0.0
      %v595 = vmax.f32 %v518, 0.0
      %v596 = vmax.f32 %v520, 0.0
      %v597 = vmax.f32 %v522, 0.0
      %v598 = vmax.f32 %v526, 0.0
      %v599 = vmax.f32 %v528, 0.0
      %v600 = vmax.f32 %v530, 0.0
      %v601 = vmax.f32 %v532, 0.0
      %v602 = vmax.f32 %v536, 0.0
      %v603 = vmax.f32 %v538, 0.0
      %v604 = vmax.f32 %v540, 0.0
      %v605 = vmax.f32 %v542, 0.0
      %v606 = vmax.f32 %v546, 0.0
      %v607 = vmax.f32 %v548, 0.0
      %v608 = vmax.f32 %v550, 0.0
      %v609 = vmax.f32 %v552, 0.0
      %v610 = vmax.f32 %v556, 0.0
      %v611 = vmax.f32 %v558, 0.0
      %v612 = vmax.f32 %v560, 0.0
      %v613 = vmax.f32 %v562, 0.0
      %v614 = vmax.f32 %v566, 0.0
      %v615 = vmax.f32 %v568, 0.0
      %v616 = vmax.f32 %v570, 0.0
      %v617 = vmax.f32 %v572, 0.0
      %v618 = vmax.f32 %v576, 0.0
      %v619 = vmax.f32 %v578, 0.0
      %v620 = vmax.f32 %v580, 0.0
      %v621 = vmax.f32 %v582, 0.0
      %v622 = vmax.f32 %v586, 0.0
      %v623 = vmax.f32 %v588, 0.0
      %v624 = vmax.f32 %v590, 0.0
      %v625 = vmax.f32 %v592, 0.0
      %v626 = vld [vmem:[#allocation2] sm:$0xff]
      %v627 = vld [vmem:[#allocation2 + $0x8] sm:$0xff]
      %v628 = vld [vmem:[#allocation2 + $0x10] sm:$0xff]
      %v629 = vld [vmem:[#allocation2 + $0x18] sm:$0xff]
      %v630 = vld [vmem:[#allocation2 + $0x20] sm:$0xff]
      %v631 = vld [vmem:[#allocation2 + $0x28] sm:$0xff]
      %v632 = vld [vmem:[#allocation2 + $0x30] sm:$0xff]
      %v633 = vld [vmem:[#allocation2 + $0x38] sm:$0xff]
      %v634 = vld [vmem:[#allocation2 + $0x40] sm:$0xff]
      %v635 = vld [vmem:[#allocation2 + $0x48] sm:$0xff]
      %v636 = vld [vmem:[#allocation2 + $0x50] sm:$0xff]
      %v637 = vld [vmem:[#allocation2 + $0x58] sm:$0xff]
      %v638 = vld [vmem:[#allocation2 + $0x60] sm:$0xff]
      %v639 = vld [vmem:[#allocation2 + $0x68] sm:$0xff]
      %v640 = vld [vmem:[#allocation2 + $0x70] sm:$0xff]
      %v641 = vld [vmem:[#allocation2 + $0x78] sm:$0xff]
      %v642 = vmax.f32 %v594, %v595
      %643 = vmax.xlane.f32.xlu0 %v642
      %v644 = vpop.xlane.xlu0 %643
      %v645 = vmax.f32 %v596, %v597
      %646 = vmax.xlane.f32.xlu0 %v645
      %v647 = vpop.xlane.xlu0 %646
      %v648 = vmax.f32 %v598, %v599
      %649 = vmax.xlane.f32.xlu0 %v648
      %v650 = vpop.xlane.xlu0 %649
      %v651 = vmax.f32 %v600, %v601
      %652 = vmax.xlane.f32.xlu0 %v651
      %v653 = vpop.xlane.xlu0 %652
      %v654 = vmax.f32 %v602, %v603
      %655 = vmax.xlane.f32.xlu0 %v654
      %v656 = vpop.xlane.xlu0 %655
      %v657 = vmax.f32 %v604, %v605
      %658 = vmax.xlane.f32.xlu0 %v657
      %v659 = vpop.xlane.xlu0 %658
      %v660 = vmax.f32 %v606, %v607
      %661 = vmax.xlane.f32.xlu0 %v660
      %v662 = vpop.xlane.xlu0 %661
      %v663 = vmax.f32 %v608, %v609
      %664 = vmax.xlane.f32.xlu0 %v663
      %v665 = vpop.xlane.xlu0 %664
      %v666 = vmax.f32 %v610, %v611
      %667 = vmax.xlane.f32.xlu0 %v666
      %v668 = vpop.xlane.xlu0 %667
      %v669 = vmax.f32 %v612, %v613
      %670 = vmax.xlane.f32.xlu0 %v669
      %v671 = vpop.xlane.xlu0 %670
      %v672 = vmax.f32 %v614, %v615
      %673 = vmax.xlane.f32.xlu0 %v672
      %v674 = vpop.xlane.xlu0 %673
      %v675 = vmax.f32 %v616, %v617
      %676 = vmax.xlane.f32.xlu0 %v675
      %v677 = vpop.xlane.xlu0 %676
      %v678 = vmax.f32 %v618, %v619
      %679 = vmax.xlane.f32.xlu0 %v678
      %v680 = vpop.xlane.xlu0 %679
      %v681 = vmax.f32 %v620, %v621
      %682 = vmax.xlane.f32.xlu0 %v681
      %v683 = vpop.xlane.xlu0 %682
      %v684 = vmax.f32 %v622, %v623
      %685 = vmax.xlane.f32.xlu0 %v684
      %v686 = vpop.xlane.xlu0 %685
      %v687 = vmax.f32 %v624, %v625
      %688 = vmax.xlane.f32.xlu0 %v687
      %v689 = vpop.xlane.xlu0 %688
      %v690 = vmax.f32 %v626, %v644
      %v691 = vmax.f32 %v627, %v647
      %v692 = vmax.f32 %v628, %v650
      %v693 = vmax.f32 %v629, %v653
      %v694 = vmax.f32 %v630, %v656
      %v695 = vmax.f32 %v631, %v659
      %v696 = vmax.f32 %v632, %v662
      %v697 = vmax.f32 %v633, %v665
      %v698 = vmax.f32 %v634, %v668
      %v699 = vmax.f32 %v635, %v671
      %v700 = vmax.f32 %v636, %v674
      %v701 = vmax.f32 %v637, %v677
      %v702 = vmax.f32 %v638, %v680
      %v703 = vmax.f32 %v639, %v683
      %v704 = vmax.f32 %v640, %v686
      %v705 = vmax.f32 %v641, %v689
      %vm706 = vcmask 7168
      %707 = vst.msk [vmem:[#allocation2] sm:$0xff] %vm706, %v690
      %708 = vst.msk [vmem:[#allocation2 + $0x8] sm:$0xff] %vm706, %v691
      %709 = vst.msk [vmem:[#allocation2 + $0x10] sm:$0xff] %vm706, %v692
      %710 = vst.msk [vmem:[#allocation2 + $0x18] sm:$0xff] %vm706, %v693
      %711 = vst.msk [vmem:[#allocation2 + $0x20] sm:$0xff] %vm706, %v694
      %712 = vst.msk [vmem:[#allocation2 + $0x28] sm:$0xff] %vm706, %v695
      %713 = vst.msk [vmem:[#allocation2 + $0x30] sm:$0xff] %vm706, %v696
      %714 = vst.msk [vmem:[#allocation2 + $0x38] sm:$0xff] %vm706, %v697
      %715 = vst.msk [vmem:[#allocation2 + $0x40] sm:$0xff] %vm706, %v698
      %716 = vst.msk [vmem:[#allocation2 + $0x48] sm:$0xff] %vm706, %v699
      %717 = vst.msk [vmem:[#allocation2 + $0x50] sm:$0xff] %vm706, %v700
      %718 = vst.msk [vmem:[#allocation2 + $0x58] sm:$0xff] %vm706, %v701
      %719 = vst.msk [vmem:[#allocation2 + $0x60] sm:$0xff] %vm706, %v702
      %720 = vst.msk [vmem:[#allocation2 + $0x68] sm:$0xff] %vm706, %v703
      %721 = vst.msk [vmem:[#allocation2 + $0x70] sm:$0xff] %vm706, %v704
      %722 = vst.msk [vmem:[#allocation2 + $0x78] sm:$0xff] %vm706, %v705
      // Predicated region
      $region45: #{densenet_forward.1} parent=39 // pred_check
        %p723 = pneg %p254
      $region46: #{densenet_forward.1} parent=39 // pred_check_branch
        %725 = sbr.rel (%p723) target = $region48
      $region47: #{densenet_forward.1} parent=39 // pred_region
        %v726 = vld [vmem:[#allocation2] sm:$0xff]
        %v727 = vld [vmem:[#allocation2 + $0x8] sm:$0xff]
        %v728 = vld [vmem:[#allocation2 + $0x10] sm:$0xff]
        %v729 = vld [vmem:[#allocation2 + $0x18] sm:$0xff]
        %v730 = vld [vmem:[#allocation2 + $0x20] sm:$0xff]
        %v731 = vld [vmem:[#allocation2 + $0x28] sm:$0xff]
        %v732 = vld [vmem:[#allocation2 + $0x30] sm:$0xff]
        %v733 = vld [vmem:[#allocation2 + $0x38] sm:$0xff]
        %v734 = vld [vmem:[#allocation2 + $0x40] sm:$0xff]
        %v735 = vld [vmem:[#allocation2 + $0x48] sm:$0xff]
        %v736 = vld [vmem:[#allocation2 + $0x50] sm:$0xff]
        %v737 = vld [vmem:[#allocation2 + $0x58] sm:$0xff]
        %v738 = vld [vmem:[#allocation2 + $0x60] sm:$0xff]
        %v739 = vld [vmem:[#allocation2 + $0x68] sm:$0xff]
        %v740 = vld [vmem:[#allocation2 + $0x70] sm:$0xff]
        %v741 = vld [vmem:[#allocation2 + $0x78] sm:$0xff]
        %v742 = vld [vmem:[%s3] sm:$0xf]
        %v743 = vld [vmem:[%s3 + $0x4] sm:$0xf]
        %v744 = vld [vmem:[%s3 + $0x8] sm:$0xf]
        %v745 = vld [vmem:[%s3 + $0xc] sm:$0xf]
        %v746 = vld [vmem:[%s3 + $0x10] sm:$0xf]
        %v747 = vld [vmem:[%s3 + $0x14] sm:$0xf]
        %v748 = vld [vmem:[%s3 + $0x18] sm:$0xf]
        %v749 = vld [vmem:[%s3 + $0x1c] sm:$0xf]
        %v750 = vld [vmem:[%s3 + $0x20] sm:$0xf]
        %v751 = vld [vmem:[%s3 + $0x24] sm:$0xf]
        %v752 = vld [vmem:[%s3 + $0x28] sm:$0xf]
        %v753 = vld [vmem:[%s3 + $0x2c] sm:$0xf]
        %v754 = vld [vmem:[%s3 + $0x30] sm:$0xf]
        %v755 = vld [vmem:[%s3 + $0x34] sm:$0xf]
        %v756 = vld [vmem:[%s3 + $0x38] sm:$0xf]
        %v757 = vld [vmem:[%s3 + $0x3c] sm:$0xf]
        %v758 = vunpack.c.l.bf16 %v742
        %v759 = vunpack.c.l.bf16 %v743
        %v760 = vunpack.c.l.bf16 %v744
        %v761 = vunpack.c.l.bf16 %v745
        %v762 = vunpack.c.l.bf16 %v746
        %v763 = vunpack.c.l.bf16 %v747
        %v764 = vunpack.c.l.bf16 %v748
        %v765 = vunpack.c.l.bf16 %v749
        %v766 = vunpack.c.l.bf16 %v750
        %v767 = vunpack.c.l.bf16 %v751
        %v768 = vunpack.c.l.bf16 %v752
        %v769 = vunpack.c.l.bf16 %v753
        %v770 = vunpack.c.l.bf16 %v754
        %v771 = vunpack.c.l.bf16 %v755
        %v772 = vunpack.c.l.bf16 %v756
        %v773 = vunpack.c.l.bf16 %v757
        %v774 = vld [vmem:[%s4] sm:$0xff]
        %v775 = vld [vmem:[%s4 + $0x8] sm:$0xff]
        %v776 = vld [vmem:[%s4 + $0x10] sm:$0xff]
        %v777 = vld [vmem:[%s4 + $0x18] sm:$0xff]
        %v778 = vld [vmem:[%s4 + $0x20] sm:$0xff]
        %v779 = vld [vmem:[%s4 + $0x28] sm:$0xff]
        %v780 = vld [vmem:[%s4 + $0x30] sm:$0xff]
        %v781 = vld [vmem:[%s4 + $0x38] sm:$0xff]
        %v782 = vld [vmem:[%s4 + $0x40] sm:$0xff]
        %v783 = vld [vmem:[%s4 + $0x48] sm:$0xff]
        %v784 = vld [vmem:[%s4 + $0x50] sm:$0xff]
        %v785 = vld [vmem:[%s4 + $0x58] sm:$0xff]
        %v786 = vld [vmem:[%s4 + $0x60] sm:$0xff]
        %v787 = vld [vmem:[%s4 + $0x68] sm:$0xff]
        %v788 = vld [vmem:[%s4 + $0x70] sm:$0xff]
        %v789 = vld [vmem:[%s4 + $0x78] sm:$0xff]
        %790 = vmatprep.subr.mxu0 0.0
        %791 = vmatpush1.msra.mxu0 %v726
        %792 = vmatprep.subr.mxu0 0.0
        %793 = vmatpush1.msra.mxu0 %v727
        %794 = vmatprep.subr.mxu0 0.0
        %795 = vmatpush1.msra.mxu0 %v728
        %796 = vmatprep.subr.mxu0 0.0
        %797 = vmatpush1.msra.mxu0 %v729
        %798 = vmatprep.subr.mxu0 0.0
        %799 = vmatpush1.msra.mxu0 %v730
        %800 = vmatprep.subr.mxu0 0.0
        %801 = vmatpush1.msra.mxu0 %v731
        %802 = vmatprep.subr.mxu0 0.0
        %803 = vmatpush1.msra.mxu0 %v732
        %804 = vmatprep.subr.mxu0 0.0
        %805 = vmatpush1.msra.mxu0 %v733
        %806 = vmatprep.subr.mxu0 0.0
        %807 = vmatpush1.msra.mxu0 %v734
        %808 = vmatprep.subr.mxu0 0.0
        %809 = vmatpush1.msra.mxu0 %v735
        %810 = vmatprep.subr.mxu0 0.0
        %811 = vmatpush1.msra.mxu0 %v736
        %812 = vmatprep.subr.mxu0 0.0
        %813 = vmatpush1.msra.mxu0 %v737
        %814 = vmatprep.subr.mxu0 0.0
        %815 = vmatpush1.msra.mxu0 %v738
        %816 = vmatprep.subr.mxu0 0.0
        %817 = vmatpush1.msra.mxu0 %v739
        %818 = vmatprep.subr.mxu0 0.0
        %819 = vmatpush1.msra.mxu0 %v740
        %820 = vmatprep.subr.mxu0 0.0
        %821 = vmatpush1.msra.mxu0 %v741
        %822 = vmatprep.subr.mxu0 0.0
        %823 = vmatpush1.msra.mxu0 0.0
        %824 = vmatprep.subr.mxu0 0.0
        %825 = vmatpush1.msra.mxu0 0.0
        %826 = vmatprep.subr.mxu0 0.0
        %827 = vmatpush1.msra.mxu0 0.0
        %828 = vmatprep.subr.mxu0 0.0
        %829 = vmatpush1.msra.mxu0 0.0
        %830 = vmatprep.subr.mxu0 0.0
        %831 = vmatpush1.msra.mxu0 0.0
        %832 = vmatprep.subr.mxu0 0.0
        %833 = vmatpush1.msra.mxu0 0.0
        %834 = vmatprep.subr.mxu0 0.0
        %835 = vmatpush1.msra.mxu0 0.0
        %836 = vmatprep.subr.mxu0 0.0
        %837 = vmatpush1.msra.mxu0 0.0
        %838 = vmatprep.subr.mxu0 0.0
        %839 = vmatpush1.msra.mxu0 0.0
        %840 = vmatprep.subr.mxu0 0.0
        %841 = vmatpush1.msra.mxu0 0.0
        %842 = vmatprep.subr.mxu0 0.0
        %843 = vmatpush1.msra.mxu0 0.0
        %844 = vmatprep.subr.mxu0 0.0
        %845 = vmatpush1.msra.mxu0 0.0
        %846 = vmatprep.subr.mxu0 0.0
        %847 = vmatpush1.msra.mxu0 0.0
        %848 = vmatprep.subr.mxu0 0.0
        %849 = vmatpush1.msra.mxu0 0.0
        %850 = vmatprep.subr.mxu0 0.0
        %851 = vmatpush1.msra.mxu0 0.0
        %852 = vmatprep.subr.mxu0 0.0
        %853 = vmatpush1.msra.mxu0 0.0
        %854 = vmatprep.mubr.f32.mxu0 0.0
        %855 = vmatmul.mubr.f32.gmra.mrb[0].mxu0 %v758
        %v856 = vpop.f32.mrb[0].mxu0
        %v857 = vadd.f32 %v774, %v856
        %v858 = vpop.f32.mrb[0].mxu0
        %859 = vmatprep.mubr.f32.mxu0 0.0
        %860 = vmatmul.mubr.f32.gmra.mrb[0].mxu0 %v759
        %v861 = vpop.f32.mrb[0].mxu0
        %v862 = vadd.f32 %v775, %v861
        %v863 = vpop.f32.mrb[0].mxu0
        %864 = vmatprep.mubr.f32.mxu0 0.0
        %865 = vmatmul.mubr.f32.gmra.mrb[0].mxu0 %v760
        %v866 = vpop.f32.mrb[0].mxu0
        %v867 = vadd.f32 %v776, %v866
        %v868 = vpop.f32.mrb[0].mxu0
        %869 = vmatprep.mubr.f32.mxu0 0.0
        %870 = vmatmul.mubr.f32.gmra.mrb[0].mxu0 %v761
        %v871 = vpop.f32.mrb[0].mxu0
        %v872 = vadd.f32 %v777, %v871
        %v873 = vpop.f32.mrb[0].mxu0
        %874 = vmatprep.mubr.f32.mxu0 0.0
        %875 = vmatmul.mubr.f32.gmra.mrb[0].mxu0 %v762
        %v876 = vpop.f32.mrb[0].mxu0
        %v877 = vadd.f32 %v778, %v876
        %v878 = vpop.f32.mrb[0].mxu0
        %879 = vmatprep.mubr.f32.mxu0 0.0
        %880 = vmatmul.mubr.f32.gmra.mrb[0].mxu0 %v763
        %v881 = vpop.f32.mrb[0].mxu0
        %v882 = vadd.f32 %v779, %v881
        %v883 = vpop.f32.mrb[0].mxu0
        %884 = vmatprep.mubr.f32.mxu0 0.0
        %885 = vmatmul.mubr.f32.gmra.mrb[0].mxu0 %v764
        %v886 = vpop.f32.mrb[0].mxu0
        %v887 = vadd.f32 %v780, %v886
        %v888 = vpop.f32.mrb[0].mxu0
        %889 = vmatprep.mubr.f32.mxu0 0.0
        %890 = vmatmul.mubr.f32.gmra.mrb[0].mxu0 %v765
        %v891 = vpop.f32.mrb[0].mxu0
        %v892 = vadd.f32 %v781, %v891
        %v893 = vpop.f32.mrb[0].mxu0
        %894 = vmatprep.mubr.f32.mxu0 0.0
        %895 = vmatmul.mubr.f32.gmra.mrb[0].mxu0 %v766
        %v896 = vpop.f32.mrb[0].mxu0
        %v897 = vadd.f32 %v782, %v896
        %v898 = vpop.f32.mrb[0].mxu0
        %899 = vmatprep.mubr.f32.mxu0 0.0
        %900 = vmatmul.mubr.f32.gmra.mrb[0].mxu0 %v767
        %v901 = vpop.f32.mrb[0].mxu0
        %v902 = vadd.f32 %v783, %v901
        %v903 = vpop.f32.mrb[0].mxu0
        %904 = vmatprep.mubr.f32.mxu0 0.0
        %905 = vmatmul.mubr.f32.gmra.mrb[0].mxu0 %v768
        %v906 = vpop.f32.mrb[0].mxu0
        %v907 = vadd.f32 %v784, %v906
        %v908 = vpop.f32.mrb[0].mxu0
        %909 = vmatprep.mubr.f32.mxu0 0.0
        %910 = vmatmul.mubr.f32.gmra.mrb[0].mxu0 %v769
        %v911 = vpop.f32.mrb[0].mxu0
        %v912 = vadd.f32 %v785, %v911
        %v913 = vpop.f32.mrb[0].mxu0
        %914 = vmatprep.mubr.f32.mxu0 0.0
        %915 = vmatmul.mubr.f32.gmra.mrb[0].mxu0 %v770
        %v916 = vpop.f32.mrb[0].mxu0
        %v917 = vadd.f32 %v786, %v916
        %v918 = vpop.f32.mrb[0].mxu0
        %919 = vmatprep.mubr.f32.mxu0 0.0
        %920 = vmatmul.mubr.f32.gmra.mrb[0].mxu0 %v771
        %v921 = vpop.f32.mrb[0].mxu0
        %v922 = vadd.f32 %v787, %v921
        %v923 = vpop.f32.mrb[0].mxu0
        %924 = vmatprep.mubr.f32.mxu0 0.0
        %925 = vmatmul.mubr.f32.gmra.mrb[0].mxu0 %v772
        %v926 = vpop.f32.mrb[0].mxu0
        %v927 = vadd.f32 %v788, %v926
        %v928 = vpop.f32.mrb[0].mxu0
        %929 = vmatprep.mubr.f32.mxu0 0.0
        %930 = vmatmul.mubr.f32.gmra.mrb[0].mxu0 %v773
        %v931 = vpop.f32.mrb[0].mxu0
        %v932 = vadd.f32 %v789, %v931
        %v933 = vpop.f32.mrb[0].mxu0
        %934 = vdwg.mxu0
        %v935 = vmul.f32 %v857, 0.5
        %v936 = vmul.f32 %v862, 0.5
        %v937 = vmul.f32 %v867, 0.5
        %v938 = vmul.f32 %v872, 0.5
        %v939 = vmul.f32 %v877, 0.5
        %v940 = vmul.f32 %v882, 0.5
        %v941 = vmul.f32 %v887, 0.5
        %v942 = vmul.f32 %v892, 0.5
        %v943 = vmul.f32 %v897, 0.5
        %v944 = vmul.f32 %v902, 0.5
        %v945 = vmul.f32 %v907, 0.5
        %v946 = vmul.f32 %v912, 0.5
        %v947 = vmul.f32 %v917, 0.5
        %v948 = vmul.f32 %v922, 0.5
        %v949 = vmul.f32 %v927, 0.5
        %v950 = vmul.f32 %v932, 0.5
        %v951 = vtanh.pop %v935
        %v952 = vtanh.pop %v936
        %v953 = vtanh.pop %v937
        %v954 = vtanh.pop %v938
        %v955 = vtanh.pop %v939
        %v956 = vtanh.pop %v940
        %v957 = vtanh.pop %v941
        %v958 = vtanh.pop %v942
        %v959 = vtanh.pop %v943
        %v960 = vtanh.pop %v944
        %v961 = vtanh.pop %v945
        %v962 = vtanh.pop %v946
        %v963 = vtanh.pop %v947
        %v964 = vtanh.pop %v948
        %v965 = vtanh.pop %v949
        %v966 = vtanh.pop %v950
        %v967 = vadd.f32 %v951, 1.0
        %v968 = vadd.f32 %v952, 1.0
        %v969 = vadd.f32 %v953, 1.0
        %v970 = vadd.f32 %v954, 1.0
        %v971 = vadd.f32 %v955, 1.0
        %v972 = vadd.f32 %v956, 1.0
        %v973 = vadd.f32 %v957, 1.0
        %v974 = vadd.f32 %v958, 1.0
        %v975 = vadd.f32 %v959, 1.0
        %v976 = vadd.f32 %v960, 1.0
        %v977 = vadd.f32 %v961, 1.0
        %v978 = vadd.f32 %v962, 1.0
        %v979 = vadd.f32 %v963, 1.0
        %v980 = vadd.f32 %v964, 1.0
        %v981 = vadd.f32 %v965, 1.0
        %v982 = vadd.f32 %v966, 1.0
        %v983 = vmul.f32 %v967, 0.5
        %v984 = vmul.f32 %v968, 0.5
        %v985 = vmul.f32 %v969, 0.5
        %v986 = vmul.f32 %v970, 0.5
        %v987 = vmul.f32 %v971, 0.5
        %v988 = vmul.f32 %v972, 0.5
        %v989 = vmul.f32 %v973, 0.5
        %v990 = vmul.f32 %v974, 0.5
        %v991 = vmul.f32 %v975, 0.5
        %v992 = vmul.f32 %v976, 0.5
        %v993 = vmul.f32 %v977, 0.5
        %v994 = vmul.f32 %v978, 0.5
        %v995 = vmul.f32 %v979, 0.5
        %v996 = vmul.f32 %v980, 0.5
        %v997 = vmul.f32 %v981, 0.5
        %v998 = vmul.f32 %v982, 0.5
        %999 = vst.msk [vmem:[%s252] sm:$0xff] %vm706, %v983
        %1000 = vst.msk [vmem:[%s252 + $0x8] sm:$0xff] %vm706, %v984
        %1001 = vst.msk [vmem:[%s252 + $0x10] sm:$0xff] %vm706, %v985
        %1002 = vst.msk [vmem:[%s252 + $0x18] sm:$0xff] %vm706, %v986
        %1003 = vst.msk [vmem:[%s252 + $0x20] sm:$0xff] %vm706, %v987
        %1004 = vst.msk [vmem:[%s252 + $0x28] sm:$0xff] %vm706, %v988
        %1005 = vst.msk [vmem:[%s252 + $0x30] sm:$0xff] %vm706, %v989
        %1006 = vst.msk [vmem:[%s252 + $0x38] sm:$0xff] %vm706, %v990
        %1007 = vst.msk [vmem:[%s252 + $0x40] sm:$0xff] %vm706, %v991
        %1008 = vst.msk [vmem:[%s252 + $0x48] sm:$0xff] %vm706, %v992
        %1009 = vst.msk [vmem:[%s252 + $0x50] sm:$0xff] %vm706, %v993
        %1010 = vst.msk [vmem:[%s252 + $0x58] sm:$0xff] %vm706, %v994
        %1011 = vst.msk [vmem:[%s252 + $0x60] sm:$0xff] %vm706, %v995
        %1012 = vst.msk [vmem:[%s252 + $0x68] sm:$0xff] %vm706, %v996
        %1013 = vst.msk [vmem:[%s252 + $0x70] sm:$0xff] %vm706, %v997
        %1014 = vst.msk [vmem:[%s252 + $0x78] sm:$0xff] %vm706, %v998
      $region48: #{densenet_forward.1} parent=39 // pred_fallthru
        _
      %p1015 = scmp.lt.s32.totalorder %s20, 1
      %s1016 = scalar_select %p1015, %s20, 1
      %s1017 = smul.addr %s1016, 16
      %s1018 = smul.addr %s1017, 8
      %s1019 = scalar_lea.vmem %s5, %s1018
      // Predicated region
      $region49: #{densenet_forward.1} parent=39 // pred_check
        %p1020 = pneg %p158
      $region50: #{densenet_forward.1} parent=39 // pred_check_branch
        %1022 = sbr.rel (%p1020) target = $region52
      $region51: #{densenet_forward.1} parent=39 // pred_region
        _
      $region52: #{densenet_forward.1} parent=39 // pred_fallthru
        _
    $region40: #{densenet_forward.1} parent=5 // pred_fallthru
      _
    %p1023 = scmp.le.s32.totalorder 2, %s11
    // Predicated region
    $region53: #{densenet_forward.1} parent=5 // pred_check
      %p1024 = pneg %p1023
    $region54: #{densenet_forward.1} parent=5 // pred_check_branch
      %1026 = sbr.rel (%p1024) target = $region56
    $region55: #{densenet_forward.1} parent=5 // pred_region
      %s1027 = ssub.s32 %s11, 2
      // Predicated region
      $region57: #{densenet_forward.1} parent=55 // pred_check
        %p1028 = pneg %p164
      $region58: #{densenet_forward.1} parent=55 // pred_check_branch
        %1030 = sbr.rel (%p1028) target = $region60
      $region59: #{densenet_forward.1} parent=55 // pred_region
        %p1031 = scmp.lt.s32.totalorder %s22, 1
        %s1032 = scalar_select %p1031, %s22, 1
        %s1033 = smul.addr %s1032, 16
        %s1034 = smul.addr %s1033, 8
        %s1035 = scalar_lea.vmem %s5, %s1034
      $region60: #{densenet_forward.1} parent=55 // pred_fallthru
        _
    $region56: #{densenet_forward.1} parent=5 // pred_fallthru
      _
  $region6: #{densenet_forward.1} parent=0 // loop_footer
    %s15 = sadd.s32 1, %s11
  $region7: #{densenet_forward.1} parent=0 // loop_footer_branch
    %10 = sbr.rel target = $region3
  $region8: #{densenet_forward.1} parent=0 // loop_exit
    _

</llo_original>
